<compile_context>
chip_gen: v7x
topology: tpu7x:2x2x1
jax: 0.10.0
libtpu: 0.0.40
codegen_flags: <defaults>
</compile_context>

<pallas_src>
import functools

import jax
import jax.numpy as jnp
import numpy as np
from jax import lax
from jax.experimental import pallas as pl
from jax.experimental.pallas import tpu as pltpu


def _round_up(n: int, m: int) -> int:
    return ((n + m - 1) // m) * m


def _vmem_limit_bytes(operand_bytes: int) -> int:
    # Generous scoped-VMEM limit: >= 32 MiB, <= 64 MiB (v7x physical VMEM).
    return int(min(64 << 20, max(32 << 20, 6 * operand_bytes)))


# ------------------------------- kernels -------------------------------------


def bayesian_linear_kernel(x_ref, wmu_ref, wsig_ref, weps_ref,
                           bmu_ref, bsig_ref, beps_ref,
                           y_ref, kl_ref, *, kl_const, out_f, in_f):
    out_p, in_p = wmu_ref.shape

    # eps arrives at the padded shape (generated directly there by the
    # wrapper -> no per-call pad op).  Zero it on padded rows/cols so the KL
    # stays padding-neutral (mu pads with 0, sigma pads with 1 at init time).
    w_eps = weps_ref[...]
    if (in_p != in_f) or (out_p != out_f):
        col = lax.broadcasted_iota(jnp.int32, (out_p, in_p), 1)
        row = lax.broadcasted_iota(jnp.int32, (out_p, in_p), 0)
        w_eps = jnp.where((col < in_f) & (row < out_f), w_eps, 0.0)

    w_sigma = wsig_ref[...]                      # (out_p, in_p)
    w = wmu_ref[...] + w_sigma * w_eps           # sampled weight

    b_eps = beps_ref[...]                        # (1, out_p)
    if out_p != out_f:
        lane = lax.broadcasted_iota(jnp.int32, b_eps.shape, 1)
        b_eps = jnp.where(lane < out_f, b_eps, 0.0)
    b_sigma = bsig_ref[...]
    b = bmu_ref[...] + b_sigma * b_eps           # sampled bias (1, out_p)

    # F.linear: y = x @ w.T + b, expressed as an A·Bᵀ contraction (MXU-native,
    # no in-kernel transpose).
    y = lax.dot_general(x_ref[...], w,
                        dimension_numbers=(((1,), (1,)), ((), ())),
                        preferred_element_type=jnp.float32)
    y_ref[...] = (y + b).astype(y_ref.dtype)

    # KL per element: log(0.1) - log(sigma) - 0.5*eps^2 + 50*w^2.
    # The constant is folded at trace time using the REAL element count;
    # padded elements (sigma=1, eps=0, w=0) contribute exactly 0 to the sums.
    kl_w = jnp.sum(-jnp.log(w_sigma) - 0.5 * (w_eps * w_eps) + 50.0 * (w * w))
    kl_b = jnp.sum(-jnp.log(b_sigma) - 0.5 * (b_eps * b_eps) + 50.0 * (b * b))
    kl_ref[0] = kl_w + kl_b + jnp.float32(kl_const)


def frozen_linear_kernel(x_ref, wmu_ref, bmu_ref, y_ref):
    # Frozen path: deterministic linear, no sigma/eps DMA, no KL chain.
    y = lax.dot_general(x_ref[...], wmu_ref[...],
                        dimension_numbers=(((1,), (1,)), ((), ())),
                        preferred_element_type=jnp.float32)
    y_ref[...] = (y + bmu_ref[...]).astype(y_ref.dtype)


# ------------------------------- wrappers -------------------------------------


def init_padded_params(w_mu, w_sigma, b_mu, b_sigma):
    """One-time (per parameter update) padding of the layer parameters.

    OUT (sublane dim of the weight tensors) is padded to a multiple of 8 only;
    IN (lane dim) is padded to a multiple of 128.  Padding is KL-neutral:
    mu pads with 0, sigma pads with 1.
    """
    OUT, IN = w_mu.shape
    OUT_s = _round_up(OUT, 8)
    IN_p = _round_up(IN, 128)

    def pad2(a, rows, cols, value):
        return jnp.pad(a, ((0, rows - a.shape[0]), (0, cols - a.shape[1])),
                       constant_values=value)

    return dict(
        out_features=OUT, in_features=IN, out_pad=OUT_s, in_pad=IN_p,
        w_mu=pad2(w_mu, OUT_s, IN_p, 0.0),
        w_sigma=pad2(w_sigma, OUT_s, IN_p, 1.0),
        b_mu=pad2(b_mu.reshape(1, OUT), 1, OUT_s, 0.0),
        b_sigma=pad2(b_sigma.reshape(1, OUT), 1, OUT_s, 1.0),
        # n_real * log(prior_sigma) folded once at init.
        kl_const=float(np.log(0.1)) * (OUT * IN + OUT),
    )


def sample_eps(params, key):
    """Draw rsample noise directly at the padded shapes (no pad op needed)."""
    kw, kb = jax.random.split(key)
    w_eps = jax.random.normal(kw, (params["out_pad"], params["in_pad"]),
                              dtype=jnp.float32)
    b_eps = jax.random.normal(kb, (1, params["out_pad"]), dtype=jnp.float32)
    return w_eps, b_eps


def bayesian_linear_forward(params, x, w_eps_pad, b_eps_pad):
    """Non-frozen forward: returns (y, kl) like forward(x, kl=True)."""
    OUT, IN = params["out_features"], params["in_features"]
    OUT_s, IN_p = params["out_pad"], params["in_pad"]
    B = x.shape[0]

    if IN_p != IN:                       # only per-forward pad left in the path
        x = jnp.pad(x, ((0, 0), (0, IN_p - IN)))

    vmem = pl.BlockSpec(memory_space=pltpu.MemorySpace.VMEM)
    smem = pl.BlockSpec(memory_space=pltpu.MemorySpace.SMEM)

    operand_bytes = 4 * (B * IN_p + 3 * OUT_s * IN_p + 3 * OUT_s + B * OUT_s)
    y, kl = pl.pallas_call(
        functools.partial(bayesian_linear_kernel,
                          kl_const=params["kl_const"], out_f=OUT, in_f=IN),
        out_shape=(jax.ShapeDtypeStruct((B, OUT_s), jnp.float32),
                   jax.ShapeDtypeStruct((1,), jnp.float32)),
        in_specs=[vmem] * 7,
        out_specs=(vmem, smem),
        compiler_params=pltpu.CompilerParams(
            vmem_limit_bytes=_vmem_limit_bytes(operand_bytes)),
    )(x, params["w_mu"], params["w_sigma"], w_eps_pad,
      params["b_mu"], params["b_sigma"], b_eps_pad)

    if OUT_s != OUT:
        y = y[:, :OUT]
    return y, kl[0]


def bayesian_linear_forward_frozen(params, x):
    """Frozen forward: returns (y, None) like forward(x, frozen=True)."""
    OUT, IN = params["out_features"], params["in_features"]
    OUT_s, IN_p = params["out_pad"], params["in_pad"]
    B = x.shape[0]

    if IN_p != IN:
        x = jnp.pad(x, ((0, 0), (0, IN_p - IN)))

    vmem = pl.BlockSpec(memory_space=pltpu.MemorySpace.VMEM)
    operand_bytes = 4 * (B * IN_p + OUT_s * IN_p + OUT_s + B * OUT_s)
    y = pl.pallas_call(
        frozen_linear_kernel,
        out_shape=jax.ShapeDtypeStruct((B, OUT_s), jnp.float32),
        in_specs=[vmem] * 3,
        out_specs=vmem,
        compiler_params=pltpu.CompilerParams(
            vmem_limit_bytes=_vmem_limit_bytes(operand_bytes)),
    )(x, params["w_mu"], params["b_mu"])

    if OUT_s != OUT:
        y = y[:, :OUT]
    return y, None


# ------------------------------- reference ------------------------------------


def reference_forward(x, w_mu, w_sigma, w_eps, b_mu, b_sigma, b_eps):
    """Pure-JAX reference mirroring the PyTorch module."""
    w = w_mu + w_sigma * w_eps
    b = b_mu + b_sigma * b_eps

    def log_prob(v, mu, sigma):
        return (-jnp.log(sigma) - 0.5 * jnp.log(2 * jnp.pi)
                - 0.5 * ((v - mu) / sigma) ** 2)

    kl = (jnp.sum(log_prob(w, w_mu, w_sigma) - log_prob(w, 0.0, 0.1))
          + jnp.sum(log_prob(b, b_mu, b_sigma) - log_prob(b, 0.0, 0.1)))
    y = x @ w.T + b
    return y, kl


if __name__ == "__main__":
    B, IN, OUT = 8, 32, 16

    key = jax.random.PRNGKey(0)
    k_x, k_wmu, k_wsig, k_bmu, k_bsig, k_eps = jax.random.split(key, 6)

    # Deterministic "reset_parameters": N(0, 0.1); sigmas made positive so log is valid.
    x = jax.random.normal(k_x, (B, IN), dtype=jnp.float32)
    w_mu = 0.1 * jax.random.normal(k_wmu, (OUT, IN), dtype=jnp.float32)
    w_sigma = jnp.abs(0.1 * jax.random.normal(k_wsig, (OUT, IN), dtype=jnp.float32)) + 1e-3
    b_mu = 0.1 * jax.random.normal(k_bmu, (OUT,), dtype=jnp.float32)
    b_sigma = jnp.abs(0.1 * jax.random.normal(k_bsig, (OUT,), dtype=jnp.float32)) + 1e-3

    # One-time padded parameter cache (re-run only when parameters change).
    params = init_padded_params(w_mu, w_sigma, b_mu, b_sigma)

    # rsample noise, drawn directly at the padded shapes.
    w_eps_pad, b_eps_pad = sample_eps(params, k_eps)

    # --- non-frozen path (kl=True) ---
    y, kl = bayesian_linear_forward(params, x, w_eps_pad, b_eps_pad)
    jax.block_until_ready((y, kl))

    w_eps = w_eps_pad[:OUT, :IN]
    b_eps = b_eps_pad[0, :OUT]
    y_ref, kl_ref = reference_forward(x, w_mu, w_sigma, w_eps, b_mu, b_sigma, b_eps)
    np.testing.assert_allclose(np.asarray(y), np.asarray(y_ref), rtol=1e-5, atol=1e-5)
    np.testing.assert_allclose(np.asarray(kl), np.asarray(kl_ref), rtol=1e-4, atol=1e-3)

    # --- frozen path (kl=None, deterministic linear) ---
    y_f, kl_f = bayesian_linear_forward_frozen(params, x)
    jax.block_until_ready(y_f)
    assert kl_f is None
    y_f_ref = x @ w_mu.T + b_mu
    np.testing.assert_allclose(np.asarray(y_f), np.asarray(y_f_ref), rtol=1e-5, atol=1e-5)

    print("KERNEL_OK")
</pallas_src>

<mosaic_0001>
module attributes {stable_mosaic.version = 11 : i64} {
  func.func @bayesian_linear_kernel(%arg0: memref<8x128xf32, #tpu.memory_space<vmem>>, %arg1: memref<16x128xf32, #tpu.memory_space<vmem>>, %arg2: memref<16x128xf32, #tpu.memory_space<vmem>>, %arg3: memref<16x128xf32, #tpu.memory_space<vmem>>, %arg4: memref<1x16xf32, #tpu.memory_space<vmem>>, %arg5: memref<1x16xf32, #tpu.memory_space<vmem>>, %arg6: memref<1x16xf32, #tpu.memory_space<vmem>>, %arg7: memref<8x16xf32, #tpu.memory_space<vmem>>, %arg8: memref<1xf32, #tpu.memory_space<smem>>) attributes {dimension_semantics = [], scalar_prefetch = 0 : i64, scratch_operands = 0 : i64, tpu.core_type = #tpu.core_type<tc>} {
    %c0 = arith.constant 0 : index
    %c0_0 = arith.constant 0 : index
    %0 = vector.load %arg3[%c0, %c0_0] : memref<16x128xf32, #tpu.memory_space<vmem>>, vector<16x128xf32>
    %1 = tpu.iota {dimensions = array<i32: 1>} : vector<16x128xi32>
    %2 = tpu.iota {dimensions = array<i32: 0>} : vector<16x128xi32>
    %c32_i32 = arith.constant 32 : i32
    %3 = vector.broadcast %c32_i32 : i32 to vector<16x128xi32>
    %4 = arith.cmpi slt, %1, %3 : vector<16x128xi32>
    %c16_i32 = arith.constant 16 : i32
    %5 = vector.broadcast %c16_i32 : i32 to vector<16x128xi32>
    %6 = arith.cmpi slt, %2, %5 : vector<16x128xi32>
    %7 = arith.andi %4, %6 : vector<16x128xi1>
    %cst = arith.constant 0.000000e+00 : f32
    %8 = vector.broadcast %cst : f32 to vector<16x128xf32>
    %9 = arith.select %7, %0, %8 : vector<16x128xi1>, vector<16x128xf32>
    %c0_1 = arith.constant 0 : index
    %c0_2 = arith.constant 0 : index
    %10 = vector.load %arg2[%c0_1, %c0_2] : memref<16x128xf32, #tpu.memory_space<vmem>>, vector<16x128xf32>
    %c0_3 = arith.constant 0 : index
    %c0_4 = arith.constant 0 : index
    %11 = vector.load %arg1[%c0_3, %c0_4] : memref<16x128xf32, #tpu.memory_space<vmem>>, vector<16x128xf32>
    %12 = arith.mulf %10, %9 : vector<16x128xf32>
    %13 = arith.addf %11, %12 : vector<16x128xf32>
    %c0_5 = arith.constant 0 : index
    %c0_6 = arith.constant 0 : index
    %14 = vector.load %arg6[%c0_5, %c0_6] : memref<1x16xf32, #tpu.memory_space<vmem>>, vector<1x16xf32>
    %c0_7 = arith.constant 0 : index
    %c0_8 = arith.constant 0 : index
    %15 = vector.load %arg5[%c0_7, %c0_8] : memref<1x16xf32, #tpu.memory_space<vmem>>, vector<1x16xf32>
    %c0_9 = arith.constant 0 : index
    %c0_10 = arith.constant 0 : index
    %16 = vector.load %arg4[%c0_9, %c0_10] : memref<1x16xf32, #tpu.memory_space<vmem>>, vector<1x16xf32>
    %17 = arith.mulf %15, %14 : vector<1x16xf32>
    %18 = arith.addf %16, %17 : vector<1x16xf32>
    %c0_11 = arith.constant 0 : index
    %c0_12 = arith.constant 0 : index
    %19 = vector.load %arg0[%c0_11, %c0_12] : memref<8x128xf32, #tpu.memory_space<vmem>>, vector<8x128xf32>
    %cst_13 = arith.constant dense<0.000000e+00> : vector<8x16xf32>
    %20 = tpu.matmul %19, %13, %cst_13 {dimension_numbers = #tpu.dot_dimension_numbers<[1], [1], [0], [0], [0, 0, 1, 0], [], []>} : vector<8x128xf32>, vector<16x128xf32>, vector<8x16xf32> -> vector<8x16xf32>
    %21 = vector.broadcast %18 : vector<1x16xf32> to vector<8x16xf32>
    %22 = arith.addf %20, %21 : vector<8x16xf32>
    %c0_14 = arith.constant 0 : index
    %c0_15 = arith.constant 0 : index
    %23 = vector.load %arg7[%c0_14, %c0_15] : memref<8x16xf32, #tpu.memory_space<vmem>>, vector<8x16xf32>
    tpu.vector_store %arg7[%c0_14, %c0_15], %22 {strides = array<i32>} : memref<8x16xf32, #tpu.memory_space<vmem>>, vector<8x16xf32>,
    %24 = math.log %10 : vector<16x128xf32>
    %cst_16 = arith.constant 0.000000e+00 : f32
    %25 = vector.broadcast %cst_16 : f32 to vector<16x128xf32>
    %26 = arith.subf %25, %24 : vector<16x128xf32>
    %27 = arith.mulf %9, %9 : vector<16x128xf32>
    %cst_17 = arith.constant 5.000000e-01 : f32
    %28 = vector.broadcast %cst_17 : f32 to vector<16x128xf32>
    %29 = arith.mulf %28, %27 : vector<16x128xf32>
    %30 = arith.subf %26, %29 : vector<16x128xf32>
    %31 = arith.mulf %13, %13 : vector<16x128xf32>
    %cst_18 = arith.constant 5.000000e+01 : f32
    %32 = vector.broadcast %cst_18 : f32 to vector<16x128xf32>
    %33 = arith.mulf %32, %31 : vector<16x128xf32>
    %34 = arith.addf %30, %33 : vector<16x128xf32>
    %35 = vector.shape_cast %34 : vector<16x128xf32> to vector<1x16x128xf32>
    %cst_19 = arith.constant dense<0.000000e+00> : vector<1xf32>
    %36 = vector.multi_reduction <add>, %35, %cst_19 [1, 2] : vector<1x16x128xf32> to vector<1xf32>
    %37 = vector.shape_cast %36 : vector<1xf32> to vector<1x1x1xf32>
    %38 = vector.extract %37[0, 0, 0] : f32 from vector<1x1x1xf32>
    %39 = math.log %15 : vector<1x16xf32>
    %cst_20 = arith.constant 0.000000e+00 : f32
    %40 = vector.broadcast %cst_20 : f32 to vector<1x16xf32>
    %41 = arith.subf %40, %39 : vector<1x16xf32>
    %42 = arith.mulf %14, %14 : vector<1x16xf32>
    %cst_21 = arith.constant 5.000000e-01 : f32
    %43 = vector.broadcast %cst_21 : f32 to vector<1x16xf32>
    %44 = arith.mulf %43, %42 : vector<1x16xf32>
    %45 = arith.subf %41, %44 : vector<1x16xf32>
    %46 = arith.mulf %18, %18 : vector<1x16xf32>
    %cst_22 = arith.constant 5.000000e+01 : f32
    %47 = vector.broadcast %cst_22 : f32 to vector<1x16xf32>
    %48 = arith.mulf %47, %46 : vector<1x16xf32>
    %49 = arith.addf %45, %48 : vector<1x16xf32>
    %50 = vector.shape_cast %49 : vector<1x16xf32> to vector<1x1x16xf32>
    %cst_23 = arith.constant dense<0.000000e+00> : vector<1xf32>
    %51 = vector.multi_reduction <add>, %50, %cst_23 [1, 2] : vector<1x1x16xf32> to vector<1xf32>
    %52 = vector.shape_cast %51 : vector<1xf32> to vector<1x1x1xf32>
    %53 = vector.extract %52[0, 0, 0] : f32 from vector<1x1x1xf32>
    %54 = arith.addf %38, %53 : f32
    %cst_24 = arith.constant -1215.76489 : f32
    %55 = arith.addf %54, %cst_24 : f32
    %c0_25 = arith.constant 0 : index
    %56 = memref.load %arg8[%c0_25] : memref<1xf32, #tpu.memory_space<smem>>
    memref.store %55, %arg8[%c0_25] : memref<1xf32, #tpu.memory_space<smem>>
    return
  }
}

</mosaic_0001>

<llo_original>
// kernel: tpu_custom_call.1
$region0: #{tpu_custom_call.1}
  #allocation0 [shape = 'u32[]', space=smem, size = 0x4, offset = 0x4, fixed_abs, tag = 'smem constant byte address 0x4 - core index']
  #allocation1 [shape = 'u32[144,128]{1,0:T(1,128)}', space=vmem, size = 0x12000, scoped, tag = 'internal scratch']
  %s0 = inlined_call_operand.hbm [shape: f32[8,128], index: 0, kind: input, shape index: {}]
  %s1 = inlined_call_operand.hbm [shape: f32[16,128], index: 1, kind: input, shape index: {}]
  %s2 = inlined_call_operand.hbm [shape: f32[16,128], index: 2, kind: input, shape index: {}]
  %s3 = inlined_call_operand.hbm [shape: f32[16,128], index: 3, kind: input, shape index: {}]
  %s4 = inlined_call_operand.vmem [shape: f32[1,16], index: 4, kind: input, shape index: {}]
  %s5 = inlined_call_operand.vmem [shape: f32[1,16], index: 5, kind: input, shape index: {}]
  %s6 = inlined_call_operand.vmem [shape: f32[1,16], index: 6, kind: input, shape index: {}]
  %s7 = inlined_call_operand.hbm [shape: f32[8,16], index: 7, kind: output, shape index: {0}]
  %s8 = inlined_call_operand.hbm [shape: f32[1], index: 8, kind: output, shape index: {1}]
  %9 = xla_tuple %s7, %s8
  %s10 = sld [smem:[#allocation0]]
  $region62: #{tpu_custom_call.1} parent=0
    _
  %s12 = ssub.s32 1, %s10
  %s13 = scalar_select 0, %s12, %s10
  $region1: #{tpu_custom_call.1} parent=0
    #allocation2 [shape = 'u8[4096]{0}', space=vmem, size = 0x1000, scoped, tag = 'input window, operand 0, single buffered']
    #allocation3 [shape = 's32[1]{0}', space=sflag, size = 0x4, scoped, tag = 'scoped memory for tpu_custom_call.1']
    #allocation4 [shape = 's32[1]{0}', space=sflag, size = 0x4, scoped, tag = 'scoped memory for tpu_custom_call.1']
    #allocation5 [shape = 's32[1]{0}', space=sflag, size = 0x4, scoped, tag = 'scoped memory for tpu_custom_call.1']
    #allocation6 [shape = 'u8[8192]{0}', space=vmem, size = 0x2000, scoped, tag = 'input window, operand 1, single buffered']
    #allocation7 [shape = 's32[1]{0}', space=sflag, size = 0x4, scoped, tag = 'scoped memory for tpu_custom_call.1']
    #allocation8 [shape = 'u8[8192]{0}', space=vmem, size = 0x2000, scoped, tag = 'input window, operand 2, single buffered']
    #allocation9 [shape = 'u8[8192]{0}', space=vmem, size = 0x2000, scoped, tag = 'input window, operand 3, single buffered']
    #allocation10 [shape = 's32[1]{0}', space=sflag, size = 0x4, scoped, tag = 'scoped memory for tpu_custom_call.1']
    #allocation11 [shape = 'u8[4096]{0}', space=vmem, size = 0x1000, scoped, tag = 'output window, operand 0, single buffered']
    #allocation12 [shape = 'u8[512]{0}', space=smem, size = 0x200, scoped, tag = 'output window, operand 1, single buffered']
    %14 = vsyncpa [#allocation3], 0
    %15 = vsyncpa [#allocation7], 0
    %16 = vsyncpa [#allocation10], 0
    %17 = vsyncpa [#allocation4], 0
    %18 = vsyncpa [#allocation5], 0
    // Predicated region
    $region2: #{tpu_custom_call.1} parent=1 // pred_check
      _
    $region3: #{tpu_custom_call.1} parent=1 // pred_check_branch
      %20 = sbr.rel (0) target = $region5
    $region4: #{tpu_custom_call.1} parent=1 // pred_region
      %s22 = ssub.s32 128, 128
      %23 = vsyncadd [#allocation3], %s22
      %s25 = sshll.u32 [#allocation2], 4
      %s26 = int_to_ptr.vmem [resolvable:$true] %s25
      %28 = dma.hbm_to_vmem [thread:$0]  %s0, 128, %s26, [#allocation3]
    $region5: #{tpu_custom_call.1} parent=1 // pred_fallthru
      _
    // Predicated region
    $region6: #{tpu_custom_call.1} parent=1 // pred_check
      _
    $region7: #{tpu_custom_call.1} parent=1 // pred_check_branch
      %30 = sbr.rel (0) target = $region9
    $region8: #{tpu_custom_call.1} parent=1 // pred_region
      %s32 = ssub.s32 256, 256
      %33 = vsyncadd [#allocation7], %s32
      %s34 = sshll.u32 [#allocation6], 4
      %s35 = int_to_ptr.vmem [resolvable:$true] %s34
      %40 = dma.hbm_to_vmem [thread:$0]  %s1, 256, %s35, [#allocation7], 128, 128, 8
    $region9: #{tpu_custom_call.1} parent=1 // pred_fallthru
      _
    // Predicated region
    $region10: #{tpu_custom_call.1} parent=1 // pred_check
      _
    $region11: #{tpu_custom_call.1} parent=1 // pred_check_branch
      %42 = sbr.rel (0) target = $region13
    $region12: #{tpu_custom_call.1} parent=1 // pred_region
      %s44 = ssub.s32 256, 256
      %45 = vsyncadd [#allocation7], %s44
      %s46 = sshll.u32 [#allocation8], 4
      %s47 = int_to_ptr.vmem [resolvable:$true] %s46
      %52 = dma.hbm_to_vmem [thread:$0]  %s2, 256, %s47, [#allocation7], 128, 128, 8
    $region13: #{tpu_custom_call.1} parent=1 // pred_fallthru
      _
    // Predicated region
    $region14: #{tpu_custom_call.1} parent=1 // pred_check
      _
    $region15: #{tpu_custom_call.1} parent=1 // pred_check_branch
      %54 = sbr.rel (0) target = $region17
    $region16: #{tpu_custom_call.1} parent=1 // pred_region
      %s56 = ssub.s32 256, 256
      %57 = vsyncadd [#allocation10], %s56
      %s58 = sshll.u32 [#allocation9], 4
      %s59 = int_to_ptr.vmem [resolvable:$true] %s58
      %64 = dma.hbm_to_vmem [thread:$0]  %s3, 256, %s59, [#allocation10], 128, 128, 8
    $region17: #{tpu_custom_call.1} parent=1 // pred_fallthru
      _
    // Predicated region
    $region18: #{tpu_custom_call.1} parent=1 // pred_check
      _
    $region19: #{tpu_custom_call.1} parent=1 // pred_check_branch
      %66 = sbr.rel (0) target = $region21
    $region20: #{tpu_custom_call.1} parent=1 // pred_region
      _
    $region21: #{tpu_custom_call.1} parent=1 // pred_fallthru
      _
    // Predicated region
    $region22: #{tpu_custom_call.1} parent=1 // pred_check
      _
    $region23: #{tpu_custom_call.1} parent=1 // pred_check_branch
      %68 = sbr.rel (0) target = $region25
    $region24: #{tpu_custom_call.1} parent=1 // pred_region
      _
    $region25: #{tpu_custom_call.1} parent=1 // pred_fallthru
      _
    // Predicated region
    $region26: #{tpu_custom_call.1} parent=1 // pred_check
      _
    $region27: #{tpu_custom_call.1} parent=1 // pred_check_branch
      %70 = sbr.rel (0) target = $region29
    $region28: #{tpu_custom_call.1} parent=1 // pred_region
      _
    $region29: #{tpu_custom_call.1} parent=1 // pred_fallthru
      _
    // Predicated region
    $region30: #{tpu_custom_call.1} parent=1 // pred_check
      _
    $region31: #{tpu_custom_call.1} parent=1 // pred_check_branch
      %72 = sbr.rel (0) target = $region33
    $region32: #{tpu_custom_call.1} parent=1 // pred_region
      %73 = dma.done [#allocation3], 128
    $region33: #{tpu_custom_call.1} parent=1 // pred_fallthru
      _
    // Predicated region
    $region34: #{tpu_custom_call.1} parent=1 // pred_check
      _
    $region35: #{tpu_custom_call.1} parent=1 // pred_check_branch
      %75 = sbr.rel (0) target = $region37
    $region36: #{tpu_custom_call.1} parent=1 // pred_region
      %76 = dma.done [#allocation7], 256
    $region37: #{tpu_custom_call.1} parent=1 // pred_fallthru
      _
    // Predicated region
    $region38: #{tpu_custom_call.1} parent=1 // pred_check
      _
    $region39: #{tpu_custom_call.1} parent=1 // pred_check_branch
      %78 = sbr.rel (0) target = $region41
    $region40: #{tpu_custom_call.1} parent=1 // pred_region
      %79 = dma.done [#allocation7], 256
    $region41: #{tpu_custom_call.1} parent=1 // pred_fallthru
      _
    // Predicated region
    $region42: #{tpu_custom_call.1} parent=1 // pred_check
      _
    $region43: #{tpu_custom_call.1} parent=1 // pred_check_branch
      %81 = sbr.rel (0) target = $region45
    $region44: #{tpu_custom_call.1} parent=1 // pred_region
      %82 = dma.done [#allocation10], 256
    $region45: #{tpu_custom_call.1} parent=1 // pred_fallthru
      _
    %v83 = vld [vmem:[#allocation9] sm:$0xff]
    %v84 = vld [vmem:[#allocation9 + $0x8] sm:$0xff]
    %v85 = vlaneseq
    %v86 = vand.u32 %v85, 127
    %v87 = vlaneseq
    %v88 = vshrl.u32 %v87, 7
    %v89 = vadd.s32 %v88, 8
    %vm90 = vcmp.lt.s32.totalorder %v86, 32
    %vm91 = vcmp.lt.s32.totalorder %v88, 16
    %vm92 = vcmp.lt.s32.totalorder %v89, 16
    %vm93 = vmand %vm90, %vm91
    %vm94 = vmand %vm90, %vm92
    %v95 = vsel %vm93, %v83, 0.0
    %v96 = vsel %vm94, %v84, 0.0
    %v97 = vld [vmem:[#allocation8] sm:$0xff]
    %v98 = vld [vmem:[#allocation8 + $0x8] sm:$0xff]
    %v99 = vld [vmem:[#allocation6] sm:$0xff]
    %v100 = vld [vmem:[#allocation6 + $0x8] sm:$0xff]
    %v101 = vmul.f32 %v97, %v95
    %v102 = vmul.f32 %v98, %v96
    %v103 = vadd.f32 %v99, %v101
    %v104 = vadd.f32 %v100, %v102
    %v105 = vld [vmem:[%s6] sm:$0x1]
    %v106 = vld [vmem:[%s5] sm:$0x1]
    %v107 = vld [vmem:[%s4] sm:$0x1]
    %v108 = vmul.f32 %v106, %v105
    %v109 = vadd.f32 %v107, %v108
    %v110 = vld [vmem:[#allocation2] sm:$0xff]
    %v112 = vlaneseq
    %v113 = vshrl.u32 %v112, 7
    %v114 = vsub.s32 0, %v113
    %v115 = vrot.slane %v109, %v114
    %117 = vmatprep.subr.mxu0 0.0
    %118 = vmatpush1.xpose.msra.mxu0 %v103
    %119 = vmatprep.subr.mxu0 0.0
    %120 = vmatpush1.xpose.msra.mxu0 %v104
    %121 = vmatprep.subr.mxu0 0.0
    %122 = vmatpush1.xpose.msra.mxu0 0.0
    %123 = vmatprep.subr.mxu0 0.0
    %124 = vmatpush1.xpose.msra.mxu0 0.0
    %125 = vmatprep.subr.mxu0 0.0
    %126 = vmatpush1.xpose.msra.mxu0 0.0
    %127 = vmatprep.subr.mxu0 0.0
    %128 = vmatpush1.xpose.msra.mxu0 0.0
    %129 = vmatprep.subr.mxu0 0.0
    %130 = vmatpush1.xpose.msra.mxu0 0.0
    %131 = vmatprep.subr.mxu0 0.0
    %132 = vmatpush1.xpose.msra.mxu0 0.0
    %133 = vmatprep.subr.mxu0 0.0
    %134 = vmatpush1.xpose.msra.mxu0 0.0
    %135 = vmatprep.subr.mxu0 0.0
    %136 = vmatpush1.xpose.msra.mxu0 0.0
    %137 = vmatprep.subr.mxu0 0.0
    %138 = vmatpush1.xpose.msra.mxu0 0.0
    %139 = vmatprep.subr.mxu0 0.0
    %140 = vmatpush1.xpose.msra.mxu0 0.0
    %141 = vmatprep.subr.mxu0 0.0
    %142 = vmatpush1.xpose.msra.mxu0 0.0
    %143 = vmatprep.subr.mxu0 0.0
    %144 = vmatpush1.xpose.msra.mxu0 0.0
    %145 = vmatprep.subr.mxu0 0.0
    %146 = vmatpush1.xpose.msra.mxu0 0.0
    %147 = vmatprep.subr.mxu0 0.0
    %148 = vmatpush1.xpose.msra.mxu0 0.0
    %149 = vmatprep.subr.mxu0 0.0
    %150 = vmatpush1.xpose.msra.mxu0 0.0
    %151 = vmatprep.subr.mxu0 0.0
    %152 = vmatpush1.xpose.msra.mxu0 0.0
    %153 = vmatprep.subr.mxu0 0.0
    %154 = vmatpush1.xpose.msra.mxu0 0.0
    %155 = vmatprep.subr.mxu0 0.0
    %156 = vmatpush1.xpose.msra.mxu0 0.0
    %157 = vmatprep.subr.mxu0 0.0
    %158 = vmatpush1.xpose.msra.mxu0 0.0
    %159 = vmatprep.subr.mxu0 0.0
    %160 = vmatpush1.xpose.msra.mxu0 0.0
    %161 = vmatprep.subr.mxu0 0.0
    %162 = vmatpush1.xpose.msra.mxu0 0.0
    %163 = vmatprep.subr.mxu0 0.0
    %164 = vmatpush1.xpose.msra.mxu0 0.0
    %165 = vmatprep.subr.mxu0 0.0
    %166 = vmatpush1.xpose.msra.mxu0 0.0
    %167 = vmatprep.subr.mxu0 0.0
    %168 = vmatpush1.xpose.msra.mxu0 0.0
    %169 = vmatprep.subr.mxu0 0.0
    %170 = vmatpush1.xpose.msra.mxu0 0.0
    %171 = vmatprep.subr.mxu0 0.0
    %172 = vmatpush1.xpose.msra.mxu0 0.0
    %173 = vmatprep.subr.mxu0 0.0
    %174 = vmatpush1.xpose.msra.mxu0 0.0
    %175 = vmatprep.subr.mxu0 0.0
    %176 = vmatpush1.xpose.msra.mxu0 0.0
    %177 = vmatprep.subr.mxu0 0.0
    %178 = vmatpush1.xpose.msra.mxu0 0.0
    %179 = vmatprep.subr.mxu0 0.0
    %180 = vmatpush1.xpose.msra.mxu0 0.0
    %181 = vmatprep.mubr.f32.mxu0 0.0
    %182 = vmatmul.mubr.f32.gmra.mrb[0].mxu0 %v110
    %v183 = vpop.f32.mrb[0].mxu0
    %v184 = vadd.f32 %v115, %v183
    %v185 = vpop.f32.mrb[0].mxu0
    %186 = vdwg.mxu0
    %vm187 = vcmask 130048
    %188 = vst.msk [vmem:[#allocation11] sm:$0xff] %vm187, %v184
    %v189 = vlog2.pop %v97
    %v190 = vmul.f32 %v189, 0.6931472
    %v191 = vlog2.pop %v98
    %v192 = vmul.f32 %v191, 0.6931472
    %v193 = vsub.f32 0.0, %v190
    %v194 = vsub.f32 0.0, %v192
    %v195 = vmul.f32 %v95, %v95
    %v196 = vmul.f32 %v96, %v96
    %v197 = vmul.f32 %v195, 0.5
    %v198 = vmul.f32 %v196, 0.5
    %v199 = vsub.f32 %v193, %v197
    %v200 = vsub.f32 %v194, %v198
    %v201 = vmul.f32 %v103, %v103
    %v202 = vmul.f32 %v104, %v104
    %v203 = vmul.f32 %v201, 50.0
    %v204 = vmul.f32 %v202, 50.0
    %v205 = vadd.f32 %v199, %v203
    %v206 = vadd.f32 %v200, %v204
    %v207 = vadd.f32 %v205, %v206
    %208 = vadd.xlane.f32.xlu0 %v207
    %v209 = vpop.xlane.xlu0 %208
    %v210 = vrot.slane %v209, 4
    %v211 = vadd.f32 %v209, %v210
    %v212 = vrot.slane %v211, 2
    %v213 = vadd.f32 %v211, %v212
    %v214 = vrot.slane %v213, 1
    %v215 = vadd.f32 %v213, %v214
    %s216 = vtos %v215
    %v217 = vlog2.pop %v106
    %v218 = vmul.f32 %v217, 0.6931472
    %v219 = vsub.f32 0.0, %v218
    %v220 = vmul.f32 %v105, %v105
    %v221 = vmul.f32 %v220, 0.5
    %v222 = vsub.f32 %v219, %v221
    %v223 = vmul.f32 %v109, %v109
    %v224 = vmul.f32 %v223, 50.0
    %v225 = vadd.f32 %v222, %v224
    %vm226 = vcmask 122880
    %v227 = vsel %vm226, %v225, 0.0
    %228 = vadd.xlane.f32.xlu0 %v227
    %v229 = vpop.xlane.xlu0 %228
    %v230 = vrot.slane %v229, 4
    %v231 = vadd.f32 %v229, %v230
    %v232 = vrot.slane %v231, 2
    %v233 = vadd.f32 %v231, %v232
    %v234 = vrot.slane %v233, 1
    %v235 = vadd.f32 %v233, %v234
    %s236 = vtos %v235
    %s237 = sadd.f32 %s216, %s236
    %s238 = sadd.f32 %s237, -1215.7649
    %s239 = scalar_lea.smem [#allocation12], 0
    %240 = sst [smem:[%s239]] %s238
    // Predicated region
    $region46: #{tpu_custom_call.1} parent=1 // pred_check
      _
    $region47: #{tpu_custom_call.1} parent=1 // pred_check_branch
      %242 = sbr.rel (0) target = $region49
    $region48: #{tpu_custom_call.1} parent=1 // pred_region
      %s244 = ssub.s32 128, 128
      %245 = vsyncadd [#allocation4], %s244
      %s247 = sshll.u32 [#allocation11], 4
      %s248 = int_to_ptr.vmem [resolvable:$true] %s247
      %250 = dma.vmem_to_hbm [thread:$0]  %s248, 128, %s7, [#allocation4]
    $region49: #{tpu_custom_call.1} parent=1 // pred_fallthru
      _
    // Predicated region
    $region50: #{tpu_custom_call.1} parent=1 // pred_check
      _
    $region51: #{tpu_custom_call.1} parent=1 // pred_check_branch
      %252 = sbr.rel (0) target = $region53
    $region52: #{tpu_custom_call.1} parent=1 // pred_region
      %s254 = ssub.s32 16, 16
      %255 = vsyncadd [#allocation5], %s254
      %258 = dma.smem_to_hbm [#allocation12], 16, %s8, [#allocation5]
    $region53: #{tpu_custom_call.1} parent=1 // pred_fallthru
      _
    // Predicated region
    $region54: #{tpu_custom_call.1} parent=1 // pred_check
      _
    $region55: #{tpu_custom_call.1} parent=1 // pred_check_branch
      %260 = sbr.rel (0) target = $region57
    $region56: #{tpu_custom_call.1} parent=1 // pred_region
      %261 = dma.done [#allocation4], 128
    $region57: #{tpu_custom_call.1} parent=1 // pred_fallthru
      _
    // Predicated region
    $region58: #{tpu_custom_call.1} parent=1 // pred_check
      _
    $region59: #{tpu_custom_call.1} parent=1 // pred_check_branch
      %263 = sbr.rel (0) target = $region61
    $region60: #{tpu_custom_call.1} parent=1 // pred_region
      %264 = dma.done [#allocation5], 16
    $region61: #{tpu_custom_call.1} parent=1 // pred_fallthru
      _
    %265 = sfence
    %266 = vsyncpa [#allocation3], 1
    %267 = vsyncpa [#allocation7], 1
    %268 = vsyncpa [#allocation10], 1
    %269 = vsyncpa [#allocation4], 1
    %270 = vsyncpa [#allocation5], 1

</llo_original>
